<compile_context>
chip_gen: v7x
topology: tpu7x:2x2x1
jax: 0.10.0
libtpu: 0.0.40
codegen_flags: <defaults>
</compile_context>

<pallas_src>
import numpy as np
import jax
import jax.numpy as jnp
from jax.experimental import pallas as pl
from jax.experimental.pallas import tpu as pltpu


def bilinear_matrix(in_size: int, out_size: int, scale_factor: float) -> jnp.ndarray:
    """Interpolation matrix A (out_size, in_size) matching torch bilinear,
    align_corners=False (src = (dst+0.5)/scale - 0.5, edge-clamped)."""
    dst = np.arange(out_size, dtype=np.float64)
    src = (dst + 0.5) / float(scale_factor) - 0.5
    src = np.clip(src, 0.0, None)
    i0 = np.minimum(np.floor(src).astype(np.int64), in_size - 1)
    i1 = np.minimum(i0 + 1, in_size - 1)
    frac = src - i0
    A = np.zeros((out_size, in_size), dtype=np.float32)
    rows = np.arange(out_size)
    A[rows, i0] += (1.0 - frac)
    A[rows, i1] += frac
    return jnp.asarray(A)


def spatial_attention_kernel(params_ref, fn_ref, fn1_ref, ah_ref, awt_ref, out_ref):
    # params (SMEM): [w_avg, w_max, bias] from the 1x1 Conv2d(2 -> 1)
    w_avg = params_ref[0]
    w_max = params_ref[1]
    bias = params_ref[2]

    # ---- spatial attention map for this row tile (VPU) ----
    fn = fn_ref[...]                                   # (C, tH, W)
    avg = jnp.mean(fn, axis=0)                         # (tH, W)
    mx = jnp.max(fn, axis=0)                           # (tH, W)
    attn = jax.nn.sigmoid(w_avg * avg + w_max * mx + bias)   # (tH, W)

    # ---- bilinear upsample as two collapsed 2-D MXU matmuls ----
    ah = ah_ref[...]                                   # (tH, Hin)   row-interp rows for this tile
    fn1_t = fn1_ref[...]                               # (Hin, C1*Win)  channel-minor low-res slab
    awt = awt_ref[...]                                 # (Win, W)    column-interp (transposed)

    c1, tH, W = out_ref.shape
    win = awt.shape[0]

    # (1) row interpolation, all channels in one matmul:  (tH, Hin) @ (Hin, C1*Win)
    rows = jnp.dot(ah, fn1_t, preferred_element_type=jnp.float32)        # (tH, C1*Win)

    # channel-major rearrangement of the small low-res intermediate so the second
    # matmul's output lands directly in NCHW block layout (lane slices + sublane concat).
    rows_cm = jnp.concatenate(
        [rows[:, c * win:(c + 1) * win] for c in range(c1)], axis=0)     # (C1*tH, Win)

    # (2) column interpolation, all channels in one matmul: (C1*tH, Win) @ (Win, W)
    up = jnp.dot(rows_cm, awt, preferred_element_type=jnp.float32)       # (C1*tH, W)
    up = up.reshape(c1, tH, W)                                           # (C1, tH, W)

    out_ref[...] = (attn[None, :, :] * up).astype(out_ref.dtype)


def _pick_row_tile(H, C, C1, W, budget_bytes=4 << 20):
    """Largest multiple-of-8 divisor of H whose fn+out row-tile fits the VMEM budget."""
    per_row_bytes = 4 * (C + C1) * W
    cap = max(8, budget_bytes // max(per_row_bytes, 1))
    if H <= cap:
        return H
    best = None
    t = 8
    while t <= min(H, cap):
        if H % t == 0:
            best = t
        t += 8
    return best if best is not None else H


def spatial_attention(fn, fn_1, conv_w, conv_b, scale_factor):
    N, C, H, W = fn.shape
    N1, C1, Hin, Win = fn_1.shape
    assert N == N1 and H == Hin * scale_factor and W == Win * scale_factor

    ah = bilinear_matrix(Hin, H, scale_factor)             # (H, Hin)
    awt = bilinear_matrix(Win, W, scale_factor).T          # (Win, W)
    params = jnp.array(
        [conv_w[0, 0, 0, 0], conv_w[0, 1, 0, 0], conv_b[0]], dtype=jnp.float32
    )

    # Pre-arrange the (small) low-res tensor so the row-interp is a single 2-D matmul
    # inside the kernel: (N, C1, Hin, Win) -> (N, Hin, C1*Win).  One cheap XLA op.
    fn1_t = jnp.transpose(fn_1, (0, 2, 1, 3)).reshape(N, Hin, C1 * Win)

    tH = _pick_row_tile(H, C, C1, W)
    assert H % tH == 0
    T = H // tH

    block_bytes = 4 * ((C + C1) * tH * W + C1 * Hin * Win + tH * Hin + Win * W)
    vmem_limit = int(min(max(4 * block_bytes, 8 << 20), 64 << 20))

    return pl.pallas_call(
        spatial_attention_kernel,
        out_shape=jax.ShapeDtypeStruct((N, C1, H, W), jnp.float32),
        grid=(N, T),
        in_specs=[
            pl.BlockSpec(memory_space=pltpu.SMEM),                          # conv params
            pl.BlockSpec((None, C, tH, W), lambda n, t: (n, 0, t, 0)),      # fn row tile
            pl.BlockSpec((None, Hin, C1 * Win), lambda n, t: (n, 0, 0)),    # fn_1 (transposed)
            pl.BlockSpec((tH, Hin), lambda n, t: (t, 0)),                   # row interp rows
            pl.BlockSpec((Win, W), lambda n, t: (0, 0)),                    # col interp (T)
        ],
        out_specs=pl.BlockSpec((None, C1, tH, W), lambda n, t: (n, 0, t, 0)),
        compiler_params=pltpu.CompilerParams(
            dimension_semantics=("parallel", "parallel"),
            vmem_limit_bytes=vmem_limit,
        ),
    )(params, fn, fn1_t, ah, awt)


def reference(fn, fn_1, conv_w, conv_b, scale_factor):
    avg = jnp.mean(fn, axis=1, keepdims=True)
    mx = jnp.max(fn, axis=1, keepdims=True)
    y = conv_w[0, 0, 0, 0] * avg + conv_w[0, 1, 0, 0] * mx + conv_b[0]
    ah = bilinear_matrix(fn_1.shape[2], fn.shape[2], scale_factor)
    aw = bilinear_matrix(fn_1.shape[3], fn.shape[3], scale_factor)
    up = jnp.einsum('hp,ncpq,wq->nchw', ah, fn_1, aw)
    return jax.nn.sigmoid(y) * up


if __name__ == "__main__":
    key = jax.random.PRNGKey(0)
    k1, k2, k3, k4 = jax.random.split(key, 4)

    N, C, H, W = 2, 4, 16, 16
    scale_factor = 2
    C1, Hin, Win = 4, H // scale_factor, W // scale_factor

    fn = jax.random.normal(k1, (N, C, H, W), dtype=jnp.float32)
    fn_1 = jax.random.normal(k2, (N, C1, Hin, Win), dtype=jnp.float32)

    # nn.Conv2d(2, 1, kernel_size=1): weight (1, 2, 1, 1), bias (1,)
    conv_w = 0.3 * jax.random.normal(k3, (1, 2, 1, 1), dtype=jnp.float32)
    conv_b = 0.1 * jax.random.normal(k4, (1,), dtype=jnp.float32)

    out = spatial_attention(fn, fn_1, conv_w, conv_b, scale_factor)
    out = jax.block_until_ready(out)

    ref = reference(fn, fn_1, conv_w, conv_b, scale_factor)
    assert out.shape == (N, C1, H, W)
    assert jnp.allclose(out, ref, atol=1e-5, rtol=1e-5)

    print("KERNEL_OK")
</pallas_src>

<mosaic_0001>
module attributes {stable_mosaic.version = 11 : i64} {
  func.func @spatial_attention_kernel(%arg0: i32, %arg1: i32, %arg2: memref<3xf32, #tpu.memory_space<smem>>, %arg3: memref<1x4x16x16xf32, #tpu.memory_space<vmem>>, %arg4: memref<1x8x32xf32, #tpu.memory_space<vmem>>, %arg5: memref<16x8xf32, #tpu.memory_space<vmem>>, %arg6: memref<8x16xf32, #tpu.memory_space<vmem>>, %arg7: memref<1x4x16x16xf32, #tpu.memory_space<vmem>>) attributes {dimension_semantics = [#tpu.dimension_semantics<parallel>, #tpu.dimension_semantics<parallel>], iteration_bounds = array<i64: 2, 1>, scalar_prefetch = 0 : i64, scratch_operands = 0 : i64, tpu.core_type = #tpu.core_type<tc>, window_params = [{transform_indices = @transform_0, window_bounds = array<i64: 3>}, {transform_indices = @transform_1, window_bounds = array<i64: 1, 4, 16, 16>}, {transform_indices = @transform_2, window_bounds = array<i64: 1, 8, 32>}, {transform_indices = @transform_3, window_bounds = array<i64: 16, 8>}, {pipeline_mode = #tpu.pipeline_mode<synchronous>, transform_indices = @transform_4, window_bounds = array<i64: 8, 16>}, {transform_indices = @transform_5, window_bounds = array<i64: 1, 4, 16, 16>}]} {
    %c0 = arith.constant 0 : index
    %0 = memref.load %arg2[%c0] : memref<3xf32, #tpu.memory_space<smem>>
    %c1 = arith.constant 1 : index
    %1 = memref.load %arg2[%c1] : memref<3xf32, #tpu.memory_space<smem>>
    %c2 = arith.constant 2 : index
    %2 = memref.load %arg2[%c2] : memref<3xf32, #tpu.memory_space<smem>>
    %c0_0 = arith.constant 0 : index
    %c0_1 = arith.constant 0 : index
    %c0_2 = arith.constant 0 : index
    %c0_3 = arith.constant 0 : index
    %3 = vector.load %arg3[%c0_0, %c0_1, %c0_2, %c0_3] : memref<1x4x16x16xf32, #tpu.memory_space<vmem>>, vector<1x4x16x16xf32>
    %4 = vector.shape_cast %3 : vector<1x4x16x16xf32> to vector<4x16x16xf32>
    %cst = arith.constant dense<0.000000e+00> : vector<16x16xf32>
    %5 = vector.multi_reduction <add>, %4, %cst [0] : vector<4x16x16xf32> to vector<16x16xf32>
    %cst_4 = arith.constant 4.000000e+00 : f32
    %6 = vector.broadcast %cst_4 : f32 to vector<16x16xf32>
    %7 = arith.divf %5, %6 : vector<16x16xf32>
    %cst_5 = arith.constant dense<0xFF800000> : vector<16x16xf32>
    %8 = vector.multi_reduction <maximumf>, %4, %cst_5 [0] : vector<4x16x16xf32> to vector<16x16xf32>
    %9 = vector.broadcast %0 : f32 to vector<16x16xf32>
    %10 = arith.mulf %9, %7 : vector<16x16xf32>
    %11 = vector.broadcast %1 : f32 to vector<16x16xf32>
    %12 = arith.mulf %11, %8 : vector<16x16xf32>
    %13 = arith.addf %10, %12 : vector<16x16xf32>
    %14 = vector.broadcast %2 : f32 to vector<16x16xf32>
    %15 = arith.addf %13, %14 : vector<16x16xf32>
    %16 = arith.negf %15 : vector<16x16xf32>
    %17 = math.exp %16 : vector<16x16xf32>
    %cst_6 = arith.constant 1.000000e+00 : f32
    %18 = vector.broadcast %cst_6 : f32 to vector<16x16xf32>
    %19 = arith.addf %18, %17 : vector<16x16xf32>
    %20 = arith.divf %18, %19 : vector<16x16xf32>
    %c0_7 = arith.constant 0 : index
    %c0_8 = arith.constant 0 : index
    %21 = vector.load %arg5[%c0_7, %c0_8] : memref<16x8xf32, #tpu.memory_space<vmem>>, vector<16x8xf32>
    %c0_9 = arith.constant 0 : index
    %c0_10 = arith.constant 0 : index
    %c0_11 = arith.constant 0 : index
    %22 = vector.load %arg4[%c0_9, %c0_10, %c0_11] : memref<1x8x32xf32, #tpu.memory_space<vmem>>, vector<1x8x32xf32>
    %23 = vector.shape_cast %22 : vector<1x8x32xf32> to vector<8x32xf32>
    %c0_12 = arith.constant 0 : index
    %c0_13 = arith.constant 0 : index
    %24 = vector.load %arg6[%c0_12, %c0_13] : memref<8x16xf32, #tpu.memory_space<vmem>>, vector<8x16xf32>
    %cst_14 = arith.constant dense<0.000000e+00> : vector<16x32xf32>
    %25 = tpu.matmul %21, %23, %cst_14 {dimension_numbers = #tpu.dot_dimension_numbers<[1], [0], [0], [1], [0, 0, 1, 1], [], []>} : vector<16x8xf32>, vector<8x32xf32>, vector<16x32xf32> -> vector<16x32xf32>
    %26 = vector.extract_strided_slice %25 {offsets = [0, 0], sizes = [16, 8], strides = [1, 1]} : vector<16x32xf32> to vector<16x8xf32>
    %27 = vector.extract_strided_slice %25 {offsets = [0, 8], sizes = [16, 8], strides = [1, 1]} : vector<16x32xf32> to vector<16x8xf32>
    %28 = vector.extract_strided_slice %25 {offsets = [0, 16], sizes = [16, 8], strides = [1, 1]} : vector<16x32xf32> to vector<16x8xf32>
    %29 = vector.extract_strided_slice %25 {offsets = [0, 24], sizes = [16, 8], strides = [1, 1]} : vector<16x32xf32> to vector<16x8xf32>
    %30 = tpu.concatenate %26, %27, %28, %29 in 0 : vector<16x8xf32>, vector<16x8xf32>, vector<16x8xf32>, vector<16x8xf32> -> vector<64x8xf32>
    %cst_15 = arith.constant dense<0.000000e+00> : vector<64x16xf32>
    %31 = tpu.matmul %30, %24, %cst_15 {dimension_numbers = #tpu.dot_dimension_numbers<[1], [0], [0], [1], [0, 0, 1, 1], [], []>} : vector<64x8xf32>, vector<8x16xf32>, vector<64x16xf32> -> vector<64x16xf32>
    %32 = vector.shape_cast %31 : vector<64x16xf32> to vector<4x16x16xf32>
    %33 = vector.shape_cast %20 : vector<16x16xf32> to vector<1x16x16xf32>
    %34 = vector.broadcast %33 : vector<1x16x16xf32> to vector<4x16x16xf32>
    %35 = arith.mulf %34, %32 : vector<4x16x16xf32>
    %c0_16 = arith.constant 0 : index
    %c0_17 = arith.constant 0 : index
    %c0_18 = arith.constant 0 : index
    %c0_19 = arith.constant 0 : index
    %36 = vector.load %arg7[%c0_16, %c0_17, %c0_18, %c0_19] : memref<1x4x16x16xf32, #tpu.memory_space<vmem>>, vector<1x4x16x16xf32>
    %37 = vector.shape_cast %36 : vector<1x4x16x16xf32> to vector<4x16x16xf32>
    %38 = vector.shape_cast %35 : vector<4x16x16xf32> to vector<1x4x16x16xf32>
    tpu.vector_store %arg7[%c0_16, %c0_17, %c0_18, %c0_19], %38 {strides = array<i32>} : memref<1x4x16x16xf32, #tpu.memory_space<vmem>>, vector<1x4x16x16xf32>,
    return
  }
  func.func @transform_0(%arg0: i32, %arg1: i32) -> i32 {
    %c0_i32 = arith.constant 0 : i32
    %c0_i32_0 = arith.constant 0 : i32
    return %c0_i32 : i32
  }
  func.func @transform_1(%arg0: i32, %arg1: i32) -> (i32, i32, i32, i32) {
    %c0_i32 = arith.constant 0 : i32
    %c0_i32_0 = arith.constant 0 : i32
    %c0_i32_1 = arith.constant 0 : i32
    return %arg0, %c0_i32, %arg1, %c0_i32_0 : i32, i32, i32, i32
  }
  func.func @transform_2(%arg0: i32, %arg1: i32) -> (i32, i32, i32) {
    %c0_i32 = arith.constant 0 : i32
    %c0_i32_0 = arith.constant 0 : i32
    %c0_i32_1 = arith.constant 0 : i32
    return %arg0, %c0_i32, %c0_i32_0 : i32, i32, i32
  }
  func.func @transform_3(%arg0: i32, %arg1: i32) -> (i32, i32) {
    %c0_i32 = arith.constant 0 : i32
    %c0_i32_0 = arith.constant 0 : i32
    return %arg1, %c0_i32 : i32, i32
  }
  func.func @transform_4(%arg0: i32, %arg1: i32) -> (i32, i32) {
    %c0_i32 = arith.constant 0 : i32
    %c0_i32_0 = arith.constant 0 : i32
    %c0_i32_1 = arith.constant 0 : i32
    return %c0_i32, %c0_i32_0 : i32, i32
  }
  func.func @transform_5(%arg0: i32, %arg1: i32) -> (i32, i32, i32, i32) {
    %c0_i32 = arith.constant 0 : i32
    %c0_i32_0 = arith.constant 0 : i32
    %c0_i32_1 = arith.constant 0 : i32
    return %arg0, %c0_i32, %arg1, %c0_i32_0 : i32, i32, i32, i32
  }
}

</mosaic_0001>

<llo_original>
// kernel: tpu_custom_call.1
$region0: #{tpu_custom_call.1}
  #allocation0 [shape = 'u32[]', space=smem, size = 0x4, offset = 0x4, fixed_abs, tag = 'smem constant byte address 0x4 - core index']
  #allocation1 [shape = 'u32[144,128]{1,0:T(1,128)}', space=vmem, size = 0x12000, scoped, tag = 'internal scratch']
  %s0 = inlined_call_operand.vmem [shape: f32[3], index: 0, kind: input, shape index: {}]
  %s1 = inlined_call_operand.hbm [shape: f32[2,4,16,16], index: 1, kind: input, shape index: {}]
  %s2 = inlined_call_operand.vmem [shape: f32[2,8,32], index: 2, kind: input, shape index: {}]
  %s3 = inlined_call_operand.vmem [shape: f32[16,8], index: 3, kind: input, shape index: {}]
  %s4 = inlined_call_operand.vmem [shape: f32[8,16], index: 4, kind: input, shape index: {}]
  %s5 = inlined_call_operand.hbm [shape: f32[2,4,16,16], index: 5, kind: output, shape index: {}]
  %s6 = sld [smem:[#allocation0]]
  $region61: #{tpu_custom_call.1} parent=0
    _
  %s8 = ssub.s32 1, %s6
  %s9 = scalar_select 0, %s8, %s6
  $region1: #{tpu_custom_call.1} parent=0
    #allocation2 [shape = 'u8[512]{0}', space=smem, size = 0x200, scoped, tag = 'input window, operand 0, single buffered']
    #allocation3 [shape = 's32[2]{0}', space=sflag, size = 0x8, scoped, tag = 'scoped memory for tpu_custom_call.1']
    #allocation4 [shape = 's32[2]{0}', space=sflag, size = 0x8, scoped, tag = 'scoped memory for tpu_custom_call.1']
    #allocation5 [shape = 's32[2]{0}', space=sflag, size = 0x8, scoped, tag = 'scoped memory for tpu_custom_call.1']
    #allocation6 [shape = 'u8[65536]{0}', space=vmem, size = 0x10000, scoped, tag = 'input window, operand 1']
    #allocation7 [shape = 'u8[65536]{0}', space=vmem, size = 0x10000, scoped, tag = 'output window, operand 0']
    %10 = vsyncpa [#allocation5], 0
    %11 = vsyncpa [#allocation3], 0
    %s12 = scalar_lea.sflag [#allocation3], 1
    %13 = vsyncpa %s12, 0
    %14 = vsyncpa [#allocation4], 0
    %s15 = scalar_lea.sflag [#allocation4], 1
    %16 = vsyncpa %s15, 0
    loop: start=0, step=1, limit=4
    $region2: #{tpu_custom_call.1} parent=1 // loop_pre_header
      _
    $region3: #{tpu_custom_call.1} parent=1 // loop_header
      %s18 = sphi 0, %s22
      %p19 = scmp.ge.s32.totalorder %s18, 4
      %s25 = sphi 0, %s37
      %s26 = sphi 0, %s33
      %s27 = sphi 0, %s25
      %s28 = sphi 0, %s26
      %s29 = sphi 0, %s27
      %s30 = sphi 0, %s28
      %s38 = sphi 0, %s38
      %s40 = sphi 0, %s38
      %s41 = sphi 0, %s40
      %s55 = sphi 0, %s41
      %s63 = sphi 0, %s65
      %s66 = sphi 0, %s63
      %s67 = sphi 0, %s66
      %s83 = sphi 0, %s67
      %s89 = sphi 0, %s91
      %s92 = sphi 0, %s89
      %s93 = sphi 0, %s92
      %s109 = sphi 0, %s93
      %s115 = sphi 0, %s117
      %s118 = sphi 0, %s115
      %s119 = sphi 0, %s118
      %s135 = sphi 0, %s119
      %s139 = sphi 0, %s139
      %s141 = sphi 0, %s139
      %s142 = sphi 0, %s141
      %s156 = sphi 0, %s142
      %s164 = sphi 0, %s166
      %s167 = sphi 0, %s164
      %s168 = sphi 0, %s167
      %s184 = sphi 0, %s168
    $region4: #{tpu_custom_call.1} parent=1 // loop_header_branch
      %21 = sbr.rel (%p19) target = $region8
    $region5: #{tpu_custom_call.1} parent=1 // loop_body
      %s23 = ssub.s32 %s18, 1
      %s24 = ssub.s32 %s18, 2
      %s31 = sadd.s32 1, %s26
      %p32 = scmp.ge.s32.totalorder %s31, 1
      %s33 = scalar_select %p32, 0, %s31
      %s34 = sadd.s32 1, %s25
      %s35 = scalar_select %p32, %s34, %s25
      %p36 = scmp.ge.s32.totalorder %s35, 2
      %s37 = scalar_select %p36, 0, %s35
      %s39 = sadd.s32 %s38, 1
      %p42 = scmp.eq.s32.totalorder %s18, 1
      %p43 = scmp.ne.s32.totalorder %s38, %s40
      %p44 = scmp.eq.s32.totalorder %s18, 0
      %p45 = por %p43, %p44
      %p46 = scmp.ne.s32.totalorder %s38, %s40
      %p47 = scmp.eq.s32.totalorder %s23, 1
      %p48 = por %p46, %p47
      %p49 = scmp.ne.s32.totalorder %s40, %s41
      %p50 = scmp.eq.s32.totalorder %s23, 0
      %p51 = por %p49, %p50
      %p52 = scmp.ne.s32.totalorder %s40, %s41
      %p53 = scmp.eq.s32.totalorder %s24, 1
      %p54 = por %p52, %p53
      %p56 = scmp.ne.s32.totalorder %s41, %s55
      %p57 = scmp.eq.s32.totalorder %s24, 0
      %p58 = por %p56, %p57
      %s59 = ssub.s32 %s25, %s37
      %s60 = ssub.s32 %s26, %s33
      %s61 = sor.u32 %s59, %s60
      %p62 = scmp.eq.s32.totalorder %s61, 0
      %s64 = sadd.s32 %s63, 1
      %s65 = scalar_select %p62, %s63, %s64
      %p68 = pneg %p62
      %p69 = scmp.eq.s32.totalorder %s18, 1
      %p70 = por %p68, %p69
      %p71 = scmp.ne.s32.totalorder %s63, %s66
      %p72 = scmp.eq.s32.totalorder %s18, 0
      %p73 = por %p71, %p72
      %p74 = scmp.ne.s32.totalorder %s63, %s66
      %p75 = scmp.eq.s32.totalorder %s23, 1
      %p76 = por %p74, %p75
      %p77 = scmp.ne.s32.totalorder %s66, %s67
      %p78 = scmp.eq.s32.totalorder %s23, 0
      %p79 = por %p77, %p78
      %p80 = scmp.ne.s32.totalorder %s66, %s67
      %p81 = scmp.eq.s32.totalorder %s24, 1
      %p82 = por %p80, %p81
      %p84 = scmp.ne.s32.totalorder %s67, %s83
      %p85 = scmp.eq.s32.totalorder %s24, 0
      %p86 = por %p84, %p85
      %s87 = ssub.s32 %s25, %s37
      %p88 = scmp.eq.s32.totalorder %s87, 0
      %s90 = sadd.s32 %s89, 1
      %s91 = scalar_select %p88, %s89, %s90
      %p94 = pneg %p88
      %p95 = scmp.eq.s32.totalorder %s18, 1
      %p96 = por %p94, %p95
      %p97 = scmp.ne.s32.totalorder %s89, %s92
      %p98 = scmp.eq.s32.totalorder %s18, 0
      %p99 = por %p97, %p98
      %p100 = scmp.ne.s32.totalorder %s89, %s92
      %p101 = scmp.eq.s32.totalorder %s23, 1
      %p102 = por %p100, %p101
      %p103 = scmp.ne.s32.totalorder %s92, %s93
      %p104 = scmp.eq.s32.totalorder %s23, 0
      %p105 = por %p103, %p104
      %p106 = scmp.ne.s32.totalorder %s92, %s93
      %p107 = scmp.eq.s32.totalorder %s24, 1
      %p108 = por %p106, %p107
      %p110 = scmp.ne.s32.totalorder %s93, %s109
      %p111 = scmp.eq.s32.totalorder %s24, 0
      %p112 = por %p110, %p111
      %s113 = ssub.s32 %s26, %s33
      %p114 = scmp.eq.s32.totalorder %s113, 0
      %s116 = sadd.s32 %s115, 1
      %s117 = scalar_select %p114, %s115, %s116
      %p120 = pneg %p114
      %p121 = scmp.eq.s32.totalorder %s18, 1
      %p122 = por %p120, %p121
      %p123 = scmp.ne.s32.totalorder %s115, %s118
      %p124 = scmp.eq.s32.totalorder %s18, 0
      %p125 = por %p123, %p124
      %p126 = scmp.ne.s32.totalorder %s115, %s118
      %p127 = scmp.eq.s32.totalorder %s23, 1
      %p128 = por %p126, %p127
      %p129 = scmp.ne.s32.totalorder %s118, %s119
      %p130 = scmp.eq.s32.totalorder %s23, 0
      %p131 = por %p129, %p130
      %p132 = scmp.ne.s32.totalorder %s118, %s119
      %p133 = scmp.eq.s32.totalorder %s24, 1
      %p134 = por %p132, %p133
      %p136 = scmp.ne.s32.totalorder %s119, %s135
      %p137 = scmp.eq.s32.totalorder %s24, 0
      %p138 = por %p136, %p137
      %s140 = sadd.s32 %s139, 1
      %p143 = scmp.eq.s32.totalorder %s18, 1
      %p144 = scmp.ne.s32.totalorder %s139, %s141
      %p145 = scmp.eq.s32.totalorder %s18, 0
      %p146 = por %p144, %p145
      %p147 = scmp.ne.s32.totalorder %s139, %s141
      %p148 = scmp.eq.s32.totalorder %s23, 1
      %p149 = por %p147, %p148
      %p150 = scmp.ne.s32.totalorder %s141, %s142
      %p151 = scmp.eq.s32.totalorder %s23, 0
      %p152 = por %p150, %p151
      %p153 = scmp.ne.s32.totalorder %s141, %s142
      %p154 = scmp.eq.s32.totalorder %s24, 1
      %p155 = por %p153, %p154
      %p157 = scmp.ne.s32.totalorder %s142, %s156
      %p158 = scmp.eq.s32.totalorder %s24, 0
      %p159 = por %p157, %p158
      %s160 = ssub.s32 %s25, %s37
      %s161 = ssub.s32 %s26, %s33
      %s162 = sor.u32 %s160, %s161
      %p163 = scmp.eq.s32.totalorder %s162, 0
      %s165 = sadd.s32 %s164, 1
      %s166 = scalar_select %p163, %s164, %s165
      %p169 = pneg %p163
      %p170 = scmp.eq.s32.totalorder %s18, 1
      %p171 = por %p169, %p170
      %p172 = scmp.ne.s32.totalorder %s164, %s167
      %p173 = scmp.eq.s32.totalorder %s18, 0
      %p174 = por %p172, %p173
      %p175 = scmp.ne.s32.totalorder %s164, %s167
      %p176 = scmp.eq.s32.totalorder %s23, 1
      %p177 = por %p175, %p176
      %p178 = scmp.ne.s32.totalorder %s167, %s168
      %p179 = scmp.eq.s32.totalorder %s23, 0
      %p180 = por %p178, %p179
      %p181 = scmp.ne.s32.totalorder %s167, %s168
      %p182 = scmp.eq.s32.totalorder %s24, 1
      %p183 = por %p181, %p182
      %p185 = scmp.ne.s32.totalorder %s168, %s184
      %p186 = scmp.eq.s32.totalorder %s24, 0
      %p187 = por %p185, %p186
      %p188 = scmp.le.s32.totalorder 1, %s18
      %p189 = scmp.lt.s32.totalorder %s18, 3
      %p190 = pnand %p188, %p189
      %p191 = pneg %p190
      // Predicated region
      $region9: #{tpu_custom_call.1} parent=5 // pred_check
        _
      $region10: #{tpu_custom_call.1} parent=5 // pred_check_branch
        %193 = sbr.rel (%p190) target = $region12
      $region11: #{tpu_custom_call.1} parent=5 // pred_region
        %s194 = ssub.s32 %s18, 1
        // Predicated region
        $region13: #{tpu_custom_call.1} parent=11 // pred_check
          %p195 = pneg %p51
        $region14: #{tpu_custom_call.1} parent=11 // pred_check_branch
          %197 = sbr.rel (%p195) target = $region16
        $region15: #{tpu_custom_call.1} parent=11 // pred_region
          %s199 = ssub.s32 16, 16
          %200 = vsyncadd [#allocation5], %s199
          %s202 = sshll.u32 %s0, 4
          %s203 = int_to_ptr.vmem [resolvable:$true] %s202
          %205 = dma.vmem_to_smem %s203, 16, [#allocation2], [#allocation5]
        $region16: #{tpu_custom_call.1} parent=11 // pred_fallthru
          _
        // Predicated region
        $region17: #{tpu_custom_call.1} parent=11 // pred_check
          %p206 = pneg %p131
        $region18: #{tpu_custom_call.1} parent=11 // pred_check_branch
          %208 = sbr.rel (%p206) target = $region20
        $region19: #{tpu_custom_call.1} parent=11 // pred_region
          %s209 = smul.u32 2, %s28
          %p210 = scmp.lt.s32.totalorder %s209, 1
          %s211 = scalar_select %p210, %s209, 1
          %s212 = smul.addr %s211, 8
          %s213 = scalar_lea.vmem %s3, %s212
          %s214 = smul.u32 2, %s28
        $region20: #{tpu_custom_call.1} parent=11 // pred_fallthru
          _
        // Predicated region
        $region21: #{tpu_custom_call.1} parent=11 // pred_check
          %p215 = pneg %p152
        $region22: #{tpu_custom_call.1} parent=11 // pred_check_branch
          %217 = sbr.rel (%p215) target = $region24
        $region23: #{tpu_custom_call.1} parent=11 // pred_region
          _
        $region24: #{tpu_custom_call.1} parent=11 // pred_fallthru
          _
      $region12: #{tpu_custom_call.1} parent=5 // pred_fallthru
        _
      %p218 = scmp.lt.s32.totalorder %s18, 2
      // Predicated region
      $region25: #{tpu_custom_call.1} parent=5 // pred_check
        %p219 = pneg %p218
      $region26: #{tpu_custom_call.1} parent=5 // pred_check_branch
        %221 = sbr.rel (%p219) target = $region28
      $region27: #{tpu_custom_call.1} parent=5 // pred_region
        // Predicated region
        $region29: #{tpu_custom_call.1} parent=27 // pred_check
          %p222 = pneg %p73
        $region30: #{tpu_custom_call.1} parent=27 // pred_check_branch
          %224 = sbr.rel (%p222) target = $region32
        $region31: #{tpu_custom_call.1} parent=27 // pred_region
          %s225 = sand.u32 %s63, 1
          %s226 = scalar_lea.sflag [#allocation3], %s225
          %s227 = sand.u32 %s63, 1
          %s228 = smul.addr %s227, 64
          %s229 = scalar_lea.vmem [#allocation6], %s228
          %s230 = smul.u32 2, %s26
          %s232 = ssub.s32 1024, 1024
          %233 = vsyncadd %s226, %s232
          %s234 = smul.addr %s25, 8
          %s235 = sadd.s32 %s230, %s234
          %s236 = smul.addr %s235, 128
          %s237 = scalar_lea.hbm %s1, %s236
          %s238 = sshll.u32 %s229, 4
          %s239 = int_to_ptr.vmem [resolvable:$true] %s238
          %244 = dma.hbm_to_vmem [thread:$0]  %s237, 1024, %s239, %s226, 128, 128, 8
        $region32: #{tpu_custom_call.1} parent=27 // pred_fallthru
          _
        // Predicated region
        $region33: #{tpu_custom_call.1} parent=27 // pred_check
          %p245 = pneg %p99
        $region34: #{tpu_custom_call.1} parent=27 // pred_check_branch
          %247 = sbr.rel (%p245) target = $region36
        $region35: #{tpu_custom_call.1} parent=27 // pred_region
          %p248 = scmp.lt.s32.totalorder %s25, 1
          %s249 = scalar_select %p248, %s25, 1
          %s250 = smul.addr %s249, 8
          %s251 = scalar_lea.vmem %s2, %s250
        $region36: #{tpu_custom_call.1} parent=27 // pred_fallthru
          _
      $region28: #{tpu_custom_call.1} parent=5 // pred_fallthru
        _
      %p252 = scmp.le.s32.totalorder 1, %s18
      %p253 = scmp.lt.s32.totalorder %s18, 3
      %p254 = pnand %p252, %p253
      %p255 = pneg %p254
      // Predicated region
      $region37: #{tpu_custom_call.1} parent=5 // pred_check
        _
      $region38: #{tpu_custom_call.1} parent=5 // pred_check_branch
        %257 = sbr.rel (%p254) target = $region40
      $region39: #{tpu_custom_call.1} parent=5 // pred_region
        %s258 = ssub.s32 %s18, 1
        // Predicated region
        $region41: #{tpu_custom_call.1} parent=39 // pred_check
          %p259 = pneg %p51
        $region42: #{tpu_custom_call.1} parent=39 // pred_check_branch
          %261 = sbr.rel (%p259) target = $region44
        $region43: #{tpu_custom_call.1} parent=39 // pred_region
          %262 = dma.done [#allocation5], 16
        $region44: #{tpu_custom_call.1} parent=39 // pred_fallthru
          _
        %s263 = sand.u32 %s66, 1
        %s264 = scalar_lea.sflag [#allocation3], %s263
        %s265 = sand.u32 %s66, 1
        %s266 = smul.addr %s265, 64
        %s267 = scalar_lea.vmem [#allocation6], %s266
        // Predicated region
        $region45: #{tpu_custom_call.1} parent=39 // pred_check
          %p268 = pneg %p79
        $region46: #{tpu_custom_call.1} parent=39 // pred_check_branch
          %270 = sbr.rel (%p268) target = $region48
        $region47: #{tpu_custom_call.1} parent=39 // pred_region
          %271 = dma.done %s264, 1024
        $region48: #{tpu_custom_call.1} parent=39 // pred_fallthru
          _
        %272 = sfence
        %p273 = pneg %p51
        %p274 = pneg %p48
        %s275 = sand.u32 %s66, 1
        %s276 = scalar_lea.sflag [#allocation3], %s275
        %s277 = sand.u32 %s66, 1
        %s278 = smul.addr %s277, 64
        %s279 = scalar_lea.vmem [#allocation6], %s278
        %p280 = pneg %p79
        %p281 = pneg %p76
        %p282 = scmp.lt.s32.totalorder %s27, 1
        %s283 = scalar_select %p282, %s27, 1
        %s284 = smul.addr %s283, 8
        %s285 = scalar_lea.vmem %s2, %s284
        %p286 = pneg %p105
        %p287 = pneg %p102
        %s288 = smul.u32 2, %s28
        %p289 = scmp.lt.s32.totalorder %s288, 1
        %s290 = scalar_select %p289, %s288, 1
        %s291 = smul.addr %s290, 8
        %s292 = scalar_lea.vmem %s3, %s291
        %p293 = pneg %p131
        %p294 = pneg %p128
        %p295 = pneg %p152
        %p296 = pneg %p149
        %p297 = pneg %p180
        %p298 = pneg %p177
        %s299 = sand.u32 %s167, 1
        %s300 = scalar_lea.sflag [#allocation4], %s299
        %s301 = sand.u32 %s167, 1
        %s302 = smul.addr %s301, 64
        %s303 = scalar_lea.vmem [#allocation7], %s302
        %s304 = smul.u32 2, %s28
        %p305 = scmp.lt.s32.totalorder %s27, 1
        %s306 = scalar_select %p305, %s27, 1
        %s307 = smul.addr %s306, 8
        %s308 = scalar_lea.vmem %s2, %s307
        %s309 = smul.u32 2, %s28
        %p310 = scmp.lt.s32.totalorder %s309, 1
        %s311 = scalar_select %p310, %s309, 1
        %s312 = smul.addr %s311, 8
        %s313 = scalar_lea.vmem %s3, %s312
        %s314 = smul.u32 2, %s28
        %s315 = smul.u32 2, %s28
        %s316 = sld [smem:[#allocation2]]
        %s317 = sld [smem:[#allocation2 + $0x1]]
        %s318 = sld [smem:[#allocation2 + $0x2]]
        %v319 = vld [vmem:[%s267] sm:$0xff]
        %v320 = vld [vmem:[%s267 + $0x8] sm:$0xff]
        %v321 = vld [vmem:[%s267 + $0x10] sm:$0xff]
        %v322 = vld [vmem:[%s267 + $0x18] sm:$0xff]
        %v323 = vld [vmem:[%s267 + $0x20] sm:$0xff]
        %v324 = vld [vmem:[%s267 + $0x28] sm:$0xff]
        %v325 = vld [vmem:[%s267 + $0x30] sm:$0xff]
        %v326 = vld [vmem:[%s267 + $0x38] sm:$0xff]
        %vm327 = vcmask 130048
        %v328 = vsel %vm327, %v319, 0.0
        %v329 = vsel %vm327, %v321, 0.0
        %v330 = vadd.f32 %v328, %v329
        %v331 = vsel %vm327, %v323, 0.0
        %v332 = vadd.f32 %v330, %v331
        %v333 = vsel %vm327, %v325, 0.0
        %v334 = vadd.f32 %v332, %v333
        %v335 = vsel %vm327, %v320, 0.0
        %v336 = vsel %vm327, %v322, 0.0
        %v337 = vadd.f32 %v335, %v336
        %v338 = vsel %vm327, %v324, 0.0
        %v339 = vadd.f32 %v337, %v338
        %v340 = vsel %vm327, %v326, 0.0
        %v341 = vadd.f32 %v339, %v340
        %v342 = vrcp.pop 4.0
        %v343 = vmul.f32 %v334, %v342
        %v344 = vmul.f32 %v341, %v342
        %v345 = vsel %vm327, %v319, -inf
        %v346 = vsel %vm327, %v321, -inf
        %v347 = vsel %vm327, %v323, -inf
        %v348 = vmax.f32 %v345, %v347
        %v349 = vsel %vm327, %v325, -inf
        %v350 = vmax.f32 %v346, %v349
        %v351 = vmax.f32 %v348, %v350
        %v352 = vsel %vm327, %v320, -inf
        %v353 = vsel %vm327, %v322, -inf
        %v354 = vsel %vm327, %v324, -inf
        %v355 = vmax.f32 %v352, %v354
        %v356 = vsel %vm327, %v326, -inf
        %v357 = vmax.f32 %v353, %v356
        %v358 = vmax.f32 %v355, %v357
        %v359 = vstv %s316
        %v360 = vmul.f32 %v359, %v343
        %v361 = vmul.f32 %v359, %v344
        %v362 = vstv %s317
        %v363 = vmul.f32 %v362, %v351
        %v364 = vmul.f32 %v362, %v358
        %v365 = vadd.f32 %v360, %v363
        %v366 = vadd.f32 %v361, %v364
        %v367 = vstv %s318
        %v368 = vadd.f32 %v365, %v367
        %v369 = vadd.f32 %v366, %v367
        %v370 = vxor.u32 %v368, 2147483648
        %v371 = vxor.u32 %v369, 2147483648
        %v372 = vmul.f32 %v370, 1.442695
        %v373 = vpow.pop %v372
        %v374 = vmul.f32 %v371, 1.442695
        %v375 = vpow.pop %v374
        %v376 = vadd.f32 %v373, 1.0
        %v377 = vadd.f32 %v375, 1.0
        %v378 = vrcp.pop %v376
        %v379 = vmul.f32 1.0, %v378
        %v380 = vrcp.pop %v377
        %v381 = vmul.f32 1.0, %v380
        %v382 = vld [vmem:[%s313] sm:$0xff]
        %v383 = vld [vmem:[%s313 + $0x8] sm:$0xff]
        %v384 = vld [vmem:[%s308] sm:$0xff]
        %v385 = vld [vmem:[%s4] sm:$0xff]
        %vm386 = vcmask 64512
        %v388 = vsel %vm386, %v382, 0
        %v391 = vsel %vm386, %v383, 0
        %393 = vmatprep.subr.mxu0 0.0
        %394 = vmatpush1.msra.mxu0 %v384
        %395 = vmatprep.subr.mxu0 0.0
        %396 = vmatpush1.msra.mxu0 0.0
        %397 = vmatprep.subr.mxu0 0.0
        %398 = vmatpush1.msra.mxu0 0.0
        %399 = vmatprep.subr.mxu0 0.0
        %400 = vmatpush1.msra.mxu0 0.0
        %401 = vmatprep.subr.mxu0 0.0
        %402 = vmatpush1.msra.mxu0 0.0
        %403 = vmatprep.subr.mxu0 0.0
        %404 = vmatpush1.msra.mxu0 0.0
        %405 = vmatprep.subr.mxu0 0.0
        %406 = vmatpush1.msra.mxu0 0.0
        %407 = vmatprep.subr.mxu0 0.0
        %408 = vmatpush1.msra.mxu0 0.0
        %409 = vmatprep.subr.mxu0 0.0
        %410 = vmatpush1.msra.mxu0 0.0
        %411 = vmatprep.subr.mxu0 0.0
        %412 = vmatpush1.msra.mxu0 0.0
        %413 = vmatprep.subr.mxu0 0.0
        %414 = vmatpush1.msra.mxu0 0.0
        %415 = vmatprep.subr.mxu0 0.0
        %416 = vmatpush1.msra.mxu0 0.0
        %417 = vmatprep.subr.mxu0 0.0
        %418 = vmatpush1.msra.mxu0 0.0
        %419 = vmatprep.subr.mxu0 0.0
        %420 = vmatpush1.msra.mxu0 0.0
        %421 = vmatprep.subr.mxu0 0.0
        %422 = vmatpush1.msra.mxu0 0.0
        %423 = vmatprep.subr.mxu0 0.0
        %424 = vmatpush1.msra.mxu0 0.0
        %425 = vmatprep.subr.mxu0 0.0
        %426 = vmatpush1.msra.mxu0 0.0
        %427 = vmatprep.subr.mxu0 0.0
        %428 = vmatpush1.msra.mxu0 0.0
        %429 = vmatprep.subr.mxu0 0.0
        %430 = vmatpush1.msra.mxu0 0.0
        %431 = vmatprep.subr.mxu0 0.0
        %432 = vmatpush1.msra.mxu0 0.0
        %433 = vmatprep.subr.mxu0 0.0
        %434 = vmatpush1.msra.mxu0 0.0
        %435 = vmatprep.subr.mxu0 0.0
        %436 = vmatpush1.msra.mxu0 0.0
        %437 = vmatprep.subr.mxu0 0.0
        %438 = vmatpush1.msra.mxu0 0.0
        %439 = vmatprep.subr.mxu0 0.0
        %440 = vmatpush1.msra.mxu0 0.0
        %441 = vmatprep.subr.mxu0 0.0
        %442 = vmatpush1.msra.mxu0 0.0
        %443 = vmatprep.subr.mxu0 0.0
        %444 = vmatpush1.msra.mxu0 0.0
        %445 = vmatprep.subr.mxu0 0.0
        %446 = vmatpush1.msra.mxu0 0.0
        %447 = vmatprep.subr.mxu0 0.0
        %448 = vmatpush1.msra.mxu0 0.0
        %449 = vmatprep.subr.mxu0 0.0
        %450 = vmatpush1.msra.mxu0 0.0
        %451 = vmatprep.subr.mxu0 0.0
        %452 = vmatpush1.msra.mxu0 0.0
        %453 = vmatprep.subr.mxu0 0.0
        %454 = vmatpush1.msra.mxu0 0.0
        %455 = vmatprep.subr.mxu0 0.0
        %456 = vmatpush1.msra.mxu0 0.0
        %457 = vmatprep.mubr.f32.mxu0 0.0
        %458 = vmatmul.mubr.f32.gmra.mrb[0].mxu0 %v388
        %v459 = vpop.f32.mrb[0].mxu0
        %v460 = vadd.f32 0.0, %v459
        %v461 = vpop.f32.mrb[0].mxu0
        %462 = vmatprep.mubr.f32.mxu0 0.0
        %463 = vmatmul.mubr.f32.gmra.mrb[0].mxu0 %v391
        %v464 = vpop.f32.mrb[0].mxu0
        %v465 = vadd.f32 0.0, %v464
        %v466 = vpop.f32.mrb[0].mxu0
        %467 = vdwg.mxu0
        %470 = vrot.lane.b32.xlu0 %v460, 120
        %v471 = vpop.permute.xlu0 %470
        %472 = vrot.lane.b32.xlu0 %v465, 120
        %v473 = vpop.permute.xlu0 %472
        %474 = vrot.lane.b32.xlu0 %v460, 112
        %v475 = vpop.permute.xlu0 %474
        %476 = vrot.lane.b32.xlu0 %v465, 112
        %v477 = vpop.permute.xlu0 %476
        %478 = vrot.lane.b32.xlu0 %v460, 104
        %v479 = vpop.permute.xlu0 %478
        %480 = vrot.lane.b32.xlu0 %v465, 104
        %v481 = vpop.permute.xlu0 %480
        %v482 = vsel %vm386, %v460, 0
        %v484 = vsel %vm386, %v465, 0
        %v486 = vsel %vm386, %v471, 0
        %v488 = vsel %vm386, %v473, 0
        %v490 = vsel %vm386, %v475, 0
        %v492 = vsel %vm386, %v477, 0
        %v494 = vsel %vm386, %v479, 0
        %v496 = vsel %vm386, %v481, 0
        %498 = vmatprep.subr.mxu0 0.0
        %499 = vmatpush1.msra.mxu0 %v385
        %500 = vmatprep.subr.mxu0 0.0
        %501 = vmatpush1.msra.mxu0 0.0
        %502 = vmatprep.subr.mxu0 0.0
        %503 = vmatpush1.msra.mxu0 0.0
        %504 = vmatprep.subr.mxu0 0.0
        %505 = vmatpush1.msra.mxu0 0.0
        %506 = vmatprep.subr.mxu0 0.0
        %507 = vmatpush1.msra.mxu0 0.0
        %508 = vmatprep.subr.mxu0 0.0
        %509 = vmatpush1.msra.mxu0 0.0
        %510 = vmatprep.subr.mxu0 0.0
        %511 = vmatpush1.msra.mxu0 0.0
        %512 = vmatprep.subr.mxu0 0.0
        %513 = vmatpush1.msra.mxu0 0.0
        %514 = vmatprep.subr.mxu0 0.0
        %515 = vmatpush1.msra.mxu0 0.0
        %516 = vmatprep.subr.mxu0 0.0
        %517 = vmatpush1.msra.mxu0 0.0
        %518 = vmatprep.subr.mxu0 0.0
        %519 = vmatpush1.msra.mxu0 0.0
        %520 = vmatprep.subr.mxu0 0.0
        %521 = vmatpush1.msra.mxu0 0.0
        %522 = vmatprep.subr.mxu0 0.0
        %523 = vmatpush1.msra.mxu0 0.0
        %524 = vmatprep.subr.mxu0 0.0
        %525 = vmatpush1.msra.mxu0 0.0
        %526 = vmatprep.subr.mxu0 0.0
        %527 = vmatpush1.msra.mxu0 0.0
        %528 = vmatprep.subr.mxu0 0.0
        %529 = vmatpush1.msra.mxu0 0.0
        %530 = vmatprep.subr.mxu0 0.0
        %531 = vmatpush1.msra.mxu0 0.0
        %532 = vmatprep.subr.mxu0 0.0
        %533 = vmatpush1.msra.mxu0 0.0
        %534 = vmatprep.subr.mxu0 0.0
        %535 = vmatpush1.msra.mxu0 0.0
        %536 = vmatprep.subr.mxu0 0.0
        %537 = vmatpush1.msra.mxu0 0.0
        %538 = vmatprep.subr.mxu0 0.0
        %539 = vmatpush1.msra.mxu0 0.0
        %540 = vmatprep.subr.mxu0 0.0
        %541 = vmatpush1.msra.mxu0 0.0
        %542 = vmatprep.subr.mxu0 0.0
        %543 = vmatpush1.msra.mxu0 0.0
        %544 = vmatprep.subr.mxu0 0.0
        %545 = vmatpush1.msra.mxu0 0.0
        %546 = vmatprep.subr.mxu0 0.0
        %547 = vmatpush1.msra.mxu0 0.0
        %548 = vmatprep.subr.mxu0 0.0
        %549 = vmatpush1.msra.mxu0 0.0
        %550 = vmatprep.subr.mxu0 0.0
        %551 = vmatpush1.msra.mxu0 0.0
        %552 = vmatprep.subr.mxu0 0.0
        %553 = vmatpush1.msra.mxu0 0.0
        %554 = vmatprep.subr.mxu0 0.0
        %555 = vmatpush1.msra.mxu0 0.0
        %556 = vmatprep.subr.mxu0 0.0
        %557 = vmatpush1.msra.mxu0 0.0
        %558 = vmatprep.subr.mxu0 0.0
        %559 = vmatpush1.msra.mxu0 0.0
        %560 = vmatprep.subr.mxu0 0.0
        %561 = vmatpush1.msra.mxu0 0.0
        %562 = vmatprep.mubr.f32.mxu0 0.0
        %563 = vmatmul.mubr.f32.gmra.mrb[0].mxu0 %v482
        %v564 = vpop.f32.mrb[0].mxu0
        %v565 = vadd.f32 0.0, %v564
        %v566 = vpop.f32.mrb[0].mxu0
        %567 = vmatprep.mubr.f32.mxu0 0.0
        %568 = vmatmul.mubr.f32.gmra.mrb[0].mxu0 %v484
        %v569 = vpop.f32.mrb[0].mxu0
        %v570 = vadd.f32 0.0, %v569
        %v571 = vpop.f32.mrb[0].mxu0
        %572 = vmatprep.mubr.f32.mxu0 0.0
        %573 = vmatmul.mubr.f32.gmra.mrb[0].mxu0 %v486
        %v574 = vpop.f32.mrb[0].mxu0
        %v575 = vadd.f32 0.0, %v574
        %v576 = vpop.f32.mrb[0].mxu0
        %577 = vmatprep.mubr.f32.mxu0 0.0
        %578 = vmatmul.mubr.f32.gmra.mrb[0].mxu0 %v488
        %v579 = vpop.f32.mrb[0].mxu0
        %v580 = vadd.f32 0.0, %v579
        %v581 = vpop.f32.mrb[0].mxu0
        %582 = vmatprep.mubr.f32.mxu0 0.0
        %583 = vmatmul.mubr.f32.gmra.mrb[0].mxu0 %v490
        %v584 = vpop.f32.mrb[0].mxu0
        %v585 = vadd.f32 0.0, %v584
        %v586 = vpop.f32.mrb[0].mxu0
        %587 = vmatprep.mubr.f32.mxu0 0.0
        %588 = vmatmul.mubr.f32.gmra.mrb[0].mxu0 %v492
        %v589 = vpop.f32.mrb[0].mxu0
        %v590 = vadd.f32 0.0, %v589
        %v591 = vpop.f32.mrb[0].mxu0
        %592 = vmatprep.mubr.f32.mxu0 0.0
        %593 = vmatmul.mubr.f32.gmra.mrb[0].mxu0 %v494
        %v594 = vpop.f32.mrb[0].mxu0
        %v595 = vadd.f32 0.0, %v594
        %v596 = vpop.f32.mrb[0].mxu0
        %597 = vmatprep.mubr.f32.mxu0 0.0
        %598 = vmatmul.mubr.f32.gmra.mrb[0].mxu0 %v496
        %v599 = vpop.f32.mrb[0].mxu0
        %v600 = vadd.f32 0.0, %v599
        %v601 = vpop.f32.mrb[0].mxu0
        %602 = vdwg.mxu0
        %v603 = vmul.f32 %v379, %v565
        %v604 = vmul.f32 %v381, %v570
        %v605 = vmul.f32 %v379, %v575
        %v606 = vmul.f32 %v381, %v580
        %v607 = vmul.f32 %v379, %v585
        %v608 = vmul.f32 %v381, %v590
        %v609 = vmul.f32 %v379, %v595
        %v610 = vmul.f32 %v381, %v600
        %611 = vst.msk [vmem:[%s303] sm:$0xff] %vm327, %v603
        %612 = vst.msk [vmem:[%s303 + $0x8] sm:$0xff] %vm327, %v604
        %613 = vst.msk [vmem:[%s303 + $0x10] sm:$0xff] %vm327, %v605
        %614 = vst.msk [vmem:[%s303 + $0x18] sm:$0xff] %vm327, %v606
        %615 = vst.msk [vmem:[%s303 + $0x20] sm:$0xff] %vm327, %v607
        %616 = vst.msk [vmem:[%s303 + $0x28] sm:$0xff] %vm327, %v608
        %617 = vst.msk [vmem:[%s303 + $0x30] sm:$0xff] %vm327, %v609
        %618 = vst.msk [vmem:[%s303 + $0x38] sm:$0xff] %vm327, %v610
        %s619 = sand.u32 %s167, 1
        %s620 = scalar_lea.sflag [#allocation4], %s619
        %s621 = sand.u32 %s167, 1
        %s622 = smul.addr %s621, 64
        %s623 = scalar_lea.vmem [#allocation7], %s622
        // Predicated region
        $region49: #{tpu_custom_call.1} parent=39 // pred_check
          %p624 = pneg %p177
        $region50: #{tpu_custom_call.1} parent=39 // pred_check_branch
          %626 = sbr.rel (%p624) target = $region52
        $region51: #{tpu_custom_call.1} parent=39 // pred_region
          %s627 = smul.u32 2, %s28
          %s629 = ssub.s32 1024, 1024
          %630 = vsyncadd %s620, %s629
          %s631 = smul.addr %s27, 8
          %s632 = sadd.s32 %s627, %s631
          %s633 = smul.addr %s632, 128
          %s634 = scalar_lea.hbm %s5, %s633
          %s635 = sshll.u32 %s623, 4
          %s636 = int_to_ptr.vmem [resolvable:$true] %s635
          %641 = dma.vmem_to_hbm [thread:$0]  %s636, 1024, %s634, %s620, 128, 128, 8
        $region52: #{tpu_custom_call.1} parent=39 // pred_fallthru
          _
      $region40: #{tpu_custom_call.1} parent=5 // pred_fallthru
        _
      %p642 = scmp.le.s32.totalorder 2, %s18
      // Predicated region
      $region53: #{tpu_custom_call.1} parent=5 // pred_check
        %p643 = pneg %p642
      $region54: #{tpu_custom_call.1} parent=5 // pred_check_branch
        %645 = sbr.rel (%p643) target = $region56
      $region55: #{tpu_custom_call.1} parent=5 // pred_region
        %s646 = ssub.s32 %s18, 2
        // Predicated region
        $region57: #{tpu_custom_call.1} parent=55 // pred_check
          %p647 = pneg %p183
        $region58: #{tpu_custom_call.1} parent=55 // pred_check_branch
          %649 = sbr.rel (%p647) target = $region60
        $region59: #{tpu_custom_call.1} parent=55 // pred_region
          %s650 = sand.u32 %s168, 1
          %s651 = scalar_lea.sflag [#allocation4], %s650
          %s652 = sand.u32 %s168, 1
          %s653 = smul.addr %s652, 64
          %s654 = scalar_lea.vmem [#allocation7], %s653
          %655 = dma.done %s651, 1024
        $region60: #{tpu_custom_call.1} parent=55 // pred_fallthru
          _
      $region56: #{tpu_custom_call.1} parent=5 // pred_fallthru
        _
    $region6: #{tpu_custom_call.1} parent=1 // loop_footer
      %s22 = sadd.s32 1, %s18
    $region7: #{tpu_custom_call.1} parent=1 // loop_footer_branch
      %17 = sbr.rel target = $region3
    $region8: #{tpu_custom_call.1} parent=1 // loop_exit
      _
    %656 = vsyncpa [#allocation3], 1
    %s657 = scalar_lea.sflag [#allocation3], 1
    %658 = vsyncpa %s657, 1
    %659 = vsyncpa [#allocation4], 1
    %s660 = scalar_lea.sflag [#allocation4], 1
    %661 = vsyncpa %s660, 1
    %662 = vsyncpa [#allocation5], 1
    %s663 = scalar_lea.sflag [#allocation5], 1
    %664 = vsyncpa %s663, 1

</llo_original>
